<compile_context>
chip_gen: v7x
topology: tpu7x:2x2x1
jax: 0.10.0
libtpu: 0.0.40
codegen_flags: <defaults>
</compile_context>

<pallas_src>
import functools
import math

import jax
import jax.numpy as jnp
import numpy as np
from jax import lax
from jax.experimental import pallas as pl
from jax.experimental.pallas import tpu as pltpu


# ---------------------------------------------------------------------------
# Pre-pass: row-wise L2 normalization (+ optional scale), f32 -> bf16, one pass.
# ---------------------------------------------------------------------------
def _normalize_rows_kernel(x_ref, o_ref, *, scale):
    # F.normalize(p=2): x / max(||x||, eps)  ==  x * rsqrt(max(||x||^2, eps^2))
    eps = 1e-12
    x = x_ref[...].astype(jnp.float32)
    inv = lax.rsqrt(jnp.maximum(jnp.sum(x * x, axis=1, keepdims=True), eps * eps))
    o_ref[...] = (x * (inv * scale)).astype(o_ref.dtype)


def normalize_rows(x, *, scale=1.0, out_dtype=jnp.bfloat16, block_r=512):
    R, D = x.shape
    block_r = min(R, block_r)
    grid = ((R + block_r - 1) // block_r,)
    return pl.pallas_call(
        functools.partial(_normalize_rows_kernel, scale=float(scale)),
        out_shape=jax.ShapeDtypeStruct((R, D), out_dtype),
        grid=grid,
        in_specs=[pl.BlockSpec((block_r, D), lambda r: (r, 0))],
        out_specs=pl.BlockSpec((block_r, D), lambda r: (r, 0)),
        compiler_params=pltpu.CompilerParams(dimension_semantics=("parallel",)),
    )(x)


# ---------------------------------------------------------------------------
# Main ArcFace kernel: tiled (tb, D) x (tc, D)^T matmul + gated margin epilogue.
# ---------------------------------------------------------------------------
def _arc_fc_kernel(tbl_ref, embed_ref, weight_ref, label_ref, out_ref, *,
                   s, m, is_pw, is_hard):
    j = pl.program_id(0)          # C-tile index (outer: weight resident, megacore split)
    i = pl.program_id(1)          # B-tile index (inner: embed streams)
    nc = pl.num_programs(0)

    # MXU: bf16 x bf16 -> f32, contracting the LAST dims of both operands so the
    # (tc, D) weight tile is used in its native layout (no transpose).
    out = lax.dot_general(
        embed_ref[...], weight_ref[...],
        dimension_numbers=(((1,), (1,)), ((), ())),
        preferred_element_type=jnp.float32)                      # (tb, tc) = s*cos(theta)

    has_label = tbl_ref[i * nc + j] != 0

    @pl.when(jnp.logical_not(has_label))
    def _():
        # No label column lands in this tile: scaled-cosine logits are final.
        out_ref[...] = out.astype(out_ref.dtype)

    @pl.when(has_label)
    def _():
        tb, tc = out.shape
        # Offset the (tb, 1) label vector instead of the full (tb, tc) iota.
        local_lab = label_ref[...] - j * tc                      # (tb, 1) int32
        col_ids = lax.broadcasted_iota(jnp.int32, (tb, tc), 1)
        mask = col_ids == local_lab                              # (tb, tc) bool

        # score = out.gather(1, label): masked lane reduce.  Rows whose label is
        # in another C-tile get an all-false mask -> score = 0, and the final
        # masked select leaves them untouched (sqrt(1 - 0) = 1 -> no NaN).
        score = jnp.sum(jnp.where(mask, out, 0.0), axis=1, keepdims=True)  # (tb, 1)

        cos_y = score * (1.0 / s)
        sin_y = jnp.sqrt(jnp.maximum(1.0 - cos_y * cos_y, 0.0))  # clamp fp noise
        arc_score = s * (cos_y * math.cos(m) - sin_y * math.sin(m))
        if is_pw:
            if not is_hard:
                arc_score = jnp.where(score > 0, arc_score, score)
            else:
                # Verbatim from the PyTorch module: `score` here is the SCALED
                # logit s*cos(theta) compared against the unscaled cos(pi - m).
                mm = math.sin(math.pi - m) * m
                th = math.cos(math.pi - m)
                arc_score = jnp.where(score - th > 0, arc_score, score - s * mm)

        # out += (arc - score) * one_hot  ->  single masked select.
        out_ref[...] = jnp.where(mask, out + (arc_score - score), out).astype(out_ref.dtype)


def arc_fully_connected(embed, weight, label, *, s, m, is_pw=True, is_hard=False,
                        block_b=None, block_c=None, out_dtype=jnp.float32):
    """embed: (B, D) f32, weight: (C, D) f32, label: (B,) int32 -> (B, C) logits.

    out_dtype=jnp.bfloat16 halves the (B, C) writeback stream on v5e if
    downstream training math tolerates it (numerics/API decision).
    """
    B, D = embed.shape
    C, D2 = weight.shape
    assert D == D2
    assert s > 0 and 0 <= m < 0.5 * math.pi

    # Hoisted pre-pass: L2-normalize rows once, fold `s` into the embed, cast to
    # bf16 once.  Removes per-grid-step rsqrt/cast (VALU/XLU) work from the hot
    # kernel and halves both operand HBM streams.
    n_embed = normalize_rows(embed, scale=s, out_dtype=jnp.bfloat16)
    n_weight = normalize_rows(weight, scale=1.0, out_dtype=jnp.bfloat16)
    label2d = label.reshape(B, 1).astype(jnp.int32)

    if block_b is None:
        block_b = min(B, 512)        # large B tile amortizes embed re-streaming
    if block_c is None:
        block_c = min(C, 1024)       # multiple of 128 when tiled -> lane-dense vst

    nb = (B + block_b - 1) // block_b
    nc = (C + block_c - 1) // block_c
    grid = (nc, nb)                  # C OUTER: weight resident per C-tile, read from HBM once;
                                     # v7x megacore split lands on the large C axis.

    # Scalar-prefetched "does tile (i, j) contain any label column" table.
    # Flattened to 1-D int32 to avoid SMEM (8, 128) 2-D padding.
    row_tile = jnp.arange(B, dtype=jnp.int32) // block_b
    col_tile = label.astype(jnp.int32) // block_c
    tile_tbl = jnp.zeros((nb, nc), jnp.int32).at[row_tile, col_tile].max(1).reshape(-1)

    kernel = functools.partial(_arc_fc_kernel, s=float(s), m=float(m),
                               is_pw=bool(is_pw), is_hard=bool(is_hard))

    out_itemsize = jnp.dtype(out_dtype).itemsize
    # Double-buffered tiles + headroom; stays well under v7x's 64 MiB physical VMEM.
    tile_bytes = 2 * (block_b * D * 2 + block_c * D * 2 + block_b * block_c * out_itemsize)
    vmem_limit = int(min(48 << 20, max(24 << 20, 4 * tile_bytes)))

    cost = pl.CostEstimate(
        flops=2 * B * C * D,
        transcendentals=B,                         # sqrt per row (label tiles only)
        bytes_accessed=(2 * C * D                  # bf16 weight, read once (C is outer)
                        + 2 * B * D * nc           # bf16 embed, re-read per C-tile
                        + out_itemsize * B * C     # logits writeback
                        + 4 * B + 4 * nb * nc),    # labels + tile table
    )

    return pl.pallas_call(
        kernel,
        out_shape=jax.ShapeDtypeStruct((B, C), out_dtype),
        grid_spec=pltpu.PrefetchScalarGridSpec(
            num_scalar_prefetch=1,
            grid=grid,
            in_specs=[
                pl.BlockSpec((block_b, D), lambda j, i, tbl: (i, 0)),   # embed (streams over B)
                pl.BlockSpec((block_c, D), lambda j, i, tbl: (j, 0)),   # weight (resident per C-tile)
                pl.BlockSpec((block_b, 1), lambda j, i, tbl: (i, 0)),   # labels
            ],
            out_specs=pl.BlockSpec((block_b, block_c), lambda j, i, tbl: (i, j)),
        ),
        compiler_params=pltpu.CompilerParams(
            dimension_semantics=("parallel", "parallel"),
            vmem_limit_bytes=vmem_limit),
        cost_estimate=cost,
    )(tile_tbl, n_embed, n_weight, label2d)


# ---------------------------------------------------------------------------
# Pure-JAX reference mirroring the PyTorch module (same bf16-operand / f32-acc
# numerical recipe as the kernel).
# ---------------------------------------------------------------------------
def _reference(embed, weight, label, *, s, m, is_pw=True, is_hard=False):
    eps = 1e-12
    inv_x = lax.rsqrt(jnp.maximum(jnp.sum(embed * embed, axis=1, keepdims=True), eps * eps))
    inv_w = lax.rsqrt(jnp.maximum(jnp.sum(weight * weight, axis=1, keepdims=True), eps * eps))
    n_x = (embed * (inv_x * s)).astype(jnp.bfloat16)
    n_w = (weight * inv_w).astype(jnp.bfloat16)
    out = lax.dot_general(n_x, n_w, dimension_numbers=(((1,), (1,)), ((), ())),
                          preferred_element_type=jnp.float32)
    score = jnp.take_along_axis(out, label.reshape(-1, 1), axis=1)
    cos_y = score * (1.0 / s)
    sin_y = jnp.sqrt(jnp.maximum(1.0 - cos_y * cos_y, 0.0))
    arc = s * (cos_y * math.cos(m) - sin_y * math.sin(m))
    if is_pw:
        if not is_hard:
            arc = jnp.where(score > 0, arc, score)
        else:
            mm = math.sin(math.pi - m) * m
            th = math.cos(math.pi - m)
            arc = jnp.where(score - th > 0, arc, score - s * mm)
    one_hot = jax.nn.one_hot(label, out.shape[1], dtype=jnp.float32)
    return out + (arc - score) * one_hot


if __name__ == "__main__":
    # Small but multi-tile: grid (2, 2) with tb=8, tc=128 exercises both the
    # gated epilogue path (tiles containing labels) and the pure-MXU skip path.
    B, D, C = 16, 128, 256
    s_param, m_param = 30.0, 0.5

    key = jax.random.PRNGKey(0)
    k_embed, k_weight, k_label = jax.random.split(key, 3)

    embed = jax.random.normal(k_embed, (B, D), dtype=jnp.float32)
    # reset_parameters(): uniform(-stdv, stdv), stdv = 1/sqrt(in_features)
    stdv = 1.0 / math.sqrt(D)
    weight = jax.random.uniform(k_weight, (C, D), dtype=jnp.float32,
                                minval=-stdv, maxval=stdv)
    label = jax.random.randint(k_label, (B,), 0, C, dtype=jnp.int32)

    for is_hard in (False, True):
        out = arc_fully_connected(embed, weight, label, s=s_param, m=m_param,
                                  is_pw=True, is_hard=is_hard,
                                  block_b=8, block_c=128)
        out = jax.block_until_ready(out)
        ref = _reference(embed, weight, label, s=s_param, m=m_param,
                         is_pw=True, is_hard=is_hard)
        # Tolerance accounts for f32 accumulation-order differences (MXU vs XLA
        # dot) on the same bf16-rounded operands.
        np.testing.assert_allclose(np.asarray(out), np.asarray(ref),
                                   rtol=5e-3, atol=5e-2)

    print("KERNEL_OK")
</pallas_src>

<mosaic_0001>
module attributes {stable_mosaic.version = 11 : i64} {
  func.func @_normalize_rows_kernel(%arg0: i32, %arg1: memref<16x128xf32, #tpu.memory_space<vmem>>, %arg2: memref<16x128xbf16, #tpu.memory_space<vmem>>) attributes {dimension_semantics = [#tpu.dimension_semantics<parallel>], iteration_bounds = array<i64: 1>, scalar_prefetch = 0 : i64, scratch_operands = 0 : i64, tpu.core_type = #tpu.core_type<tc>, window_params = [{transform_indices = @transform_0, window_bounds = array<i64: 16, 128>}, {transform_indices = @transform_1, window_bounds = array<i64: 16, 128>}]} {
    %c0 = arith.constant 0 : index
    %c0_0 = arith.constant 0 : index
    %0 = vector.load %arg1[%c0, %c0_0] : memref<16x128xf32, #tpu.memory_space<vmem>>, vector<16x128xf32>
    %1 = arith.mulf %0, %0 : vector<16x128xf32>
    %cst = arith.constant dense<0.000000e+00> : vector<16xf32>
    %2 = vector.multi_reduction <add>, %1, %cst [1] : vector<16x128xf32> to vector<16xf32>
    %3 = vector.shape_cast %2 : vector<16xf32> to vector<16x1xf32>
    %cst_1 = arith.constant 1.000000e-24 : f32
    %4 = vector.broadcast %cst_1 : f32 to vector<16x1xf32>
    %5 = arith.maximumf %3, %4 : vector<16x1xf32>
    %6 = math.rsqrt %5 : vector<16x1xf32>
    %cst_2 = arith.constant 3.000000e+01 : f32
    %7 = vector.broadcast %cst_2 : f32 to vector<16x1xf32>
    %8 = arith.mulf %6, %7 : vector<16x1xf32>
    %9 = vector.broadcast %8 : vector<16x1xf32> to vector<16x128xf32>
    %10 = arith.mulf %0, %9 : vector<16x128xf32>
    %11 = arith.truncf %10 : vector<16x128xf32> to vector<16x128xbf16>
    %c0_3 = arith.constant 0 : index
    %c0_4 = arith.constant 0 : index
    %12 = vector.load %arg2[%c0_3, %c0_4] : memref<16x128xbf16, #tpu.memory_space<vmem>>, vector<16x128xbf16>
    tpu.vector_store %arg2[%c0_3, %c0_4], %11 {strides = array<i32>} : memref<16x128xbf16, #tpu.memory_space<vmem>>, vector<16x128xbf16>,
    return
  }
  func.func @transform_0(%arg0: i32) -> (i32, i32) {
    %c0_i32 = arith.constant 0 : i32
    %c0_i32_0 = arith.constant 0 : i32
    return %arg0, %c0_i32 : i32, i32
  }
  func.func @transform_1(%arg0: i32) -> (i32, i32) {
    %c0_i32 = arith.constant 0 : i32
    %c0_i32_0 = arith.constant 0 : i32
    return %arg0, %c0_i32 : i32, i32
  }
}

</mosaic_0001>

<llo_original>
// kernel: tpu_custom_call.1
$region0: #{tpu_custom_call.1}
  #allocation0 [shape = 'u32[]', space=smem, size = 0x4, offset = 0x4, fixed_abs, tag = 'smem constant byte address 0x4 - core index']
  #allocation1 [shape = 'u32[144,128]{1,0:T(1,128)}', space=vmem, size = 0x12000, scoped, tag = 'internal scratch']
  %s0 = inlined_call_operand.hbm [shape: f32[16,128], index: 0, kind: input, shape index: {}]
  %s1 = inlined_call_operand.hbm [shape: bf16[16,128], index: 1, kind: output, shape index: {}]
  %s2 = sld [smem:[#allocation0]]
  $region18: #{tpu_custom_call.1} parent=0
    _
  %s4 = ssub.s32 1, %s2
  %s5 = scalar_select 0, %s4, %s2
  $region1: #{tpu_custom_call.1} parent=0
    #allocation2 [shape = 'u8[8192]{0}', space=vmem, size = 0x2000, scoped, tag = 'input window, operand 0, single buffered']
    #allocation3 [shape = 's32[1]{0}', space=sflag, size = 0x4, scoped, tag = 'scoped memory for tpu_custom_call.1']
    #allocation4 [shape = 's32[1]{0}', space=sflag, size = 0x4, scoped, tag = 'scoped memory for tpu_custom_call.1']
    #allocation5 [shape = 'u8[4096]{0}', space=vmem, size = 0x1000, scoped, tag = 'output window, operand 0, single buffered']
    %6 = vsyncpa [#allocation3], 0
    %7 = vsyncpa [#allocation4], 0
    // Predicated region
    $region2: #{tpu_custom_call.1} parent=1 // pred_check
      _
    $region3: #{tpu_custom_call.1} parent=1 // pred_check_branch
      %9 = sbr.rel (0) target = $region5
    $region4: #{tpu_custom_call.1} parent=1 // pred_region
      %s11 = ssub.s32 256, 256
      %12 = vsyncadd [#allocation3], %s11
      %s13 = sshll.u32 [#allocation2], 4
      %s14 = int_to_ptr.vmem [resolvable:$true] %s13
      %19 = dma.hbm_to_vmem [thread:$0]  %s0, 256, %s14, [#allocation3], 128, 128, 8
    $region5: #{tpu_custom_call.1} parent=1 // pred_fallthru
      _
    // Predicated region
    $region6: #{tpu_custom_call.1} parent=1 // pred_check
      _
    $region7: #{tpu_custom_call.1} parent=1 // pred_check_branch
      %21 = sbr.rel (0) target = $region9
    $region8: #{tpu_custom_call.1} parent=1 // pred_region
      %22 = dma.done [#allocation3], 256
    $region9: #{tpu_custom_call.1} parent=1 // pred_fallthru
      _
    %v23 = vld [vmem:[#allocation2] sm:$0xff]
    %v24 = vld [vmem:[#allocation2 + $0x8] sm:$0xff]
    %v25 = vmul.f32 %v23, %v23
    %v26 = vmul.f32 %v24, %v24
    %27 = vadd.xlane.f32.xlu0 %v25
    %v28 = vpop.xlane.xlu0 %27
    %29 = vadd.xlane.f32.xlu0 %v26
    %v30 = vpop.xlane.xlu0 %29
    %v31 = vmax.f32 %v28, 1e-24
    %v32 = vmax.f32 %v30, 1e-24
    %v33 = vrsqrt.pop %v31
    %v34 = vrsqrt.pop %v32
    %v35 = vmul.f32 %v33, 30.0
    %v36 = vmul.f32 %v34, 30.0
    %v37 = vmul.f32 %v23, %v35
    %v38 = vmul.f32 %v24, %v36
    %v39 = vpack.c.bf16 %v38, %v37
    %v41 = vunpack.c.l.b16 %v39
    %v42 = vunpack.c.h.b16 %v39
    %v43 = vpack.c.b16 %v41, %v41
    %v44 = vpack.c.b16 %v42, %v42
    %47 = vst [vmem:[#allocation5] sm:$0xf] %v43
    %48 = vst [vmem:[#allocation5 + $0x4] sm:$0xf] %v44
    // Predicated region
    $region10: #{tpu_custom_call.1} parent=1 // pred_check
      _
    $region11: #{tpu_custom_call.1} parent=1 // pred_check_branch
      %50 = sbr.rel (0) target = $region13
    $region12: #{tpu_custom_call.1} parent=1 // pred_region
      %s52 = ssub.s32 128, 128
      %53 = vsyncadd [#allocation4], %s52
      %s54 = sshll.u32 [#allocation5], 4
      %s55 = int_to_ptr.vmem [resolvable:$true] %s54
      %60 = dma.vmem_to_hbm [thread:$0]  %s55, 128, %s1, [#allocation4], 64, 64, 4
    $region13: #{tpu_custom_call.1} parent=1 // pred_fallthru
      _
    // Predicated region
    $region14: #{tpu_custom_call.1} parent=1 // pred_check
      _
    $region15: #{tpu_custom_call.1} parent=1 // pred_check_branch
      %62 = sbr.rel (0) target = $region17
    $region16: #{tpu_custom_call.1} parent=1 // pred_region
      %63 = dma.done [#allocation4], 128
    $region17: #{tpu_custom_call.1} parent=1 // pred_fallthru
      _
    %64 = vsyncpa [#allocation3], 1
    %65 = vsyncpa [#allocation4], 1

</llo_original>
